<compile_context>
chip_gen: v7x
topology: tpu7x:2x2x1
jax: 0.10.0
libtpu: 0.0.40
codegen_flags: <defaults>
</compile_context>

<pallas_src>
import functools

import jax
import jax.numpy as jnp
from jax.experimental import pallas as pl
from jax.experimental.pallas import tpu as pltpu


def _round_up(x, m):
    return (x + m - 1) // m * m


def _cdiv(a, b):
    return -(-a // b)


def dqn_kernel(x_ref, w1_ref, b1_ref, w2_ref, b2_ref, o_ref):
    # Cast the x tile to the weight compute dtype (bf16) in-kernel; a few VPU ops
    # fully hidden under the DMA / matmul, avoids a wrapper-side convert of x.
    x = x_ref[...].astype(w1_ref.dtype)
    # Layer 1: x @ W1 on the MXU (bf16 in, f32 accumulate); bias + ReLU on the VPU.
    # NOTE: K = in_dim is tiny (4 for CartPole) so the MXU push is nearly empty; the
    # kernel is DMA/overhead-bound and the MXU slot is otherwise idle, so this is fine.
    h = jnp.dot(x, w1_ref[...], preferred_element_type=jnp.float32)
    h = jnp.maximum(h + b1_ref[...], 0.0)
    # Layer 2: single bf16 cast of the hidden activations, h @ W2 with f32
    # accumulation, f32 bias add, lane-dense (128-col padded) bf16 store.
    out = jnp.dot(h.astype(w2_ref.dtype), w2_ref[...],
                  preferred_element_type=jnp.float32)
    o_ref[...] = (out + b2_ref[...]).astype(o_ref.dtype)


def prepare_dqn_params(w1, b1, w2, b2):
    """One-time parameter preprocessing (hoisted out of the per-call forward path).

    * Accepts 1-D or (1, n) biases.
    * Pads W2 / b2 to a multiple of 128 output columns (lane-dense stores; padded
      columns are exactly zero and are stripped by dqn_forward).
    * Casts weights to bf16 (MXU fast path) and biases to f32 (added to the f32
      accumulator inside the kernel).
    """
    if b1.ndim == 1:
        b1 = b1[None, :]
    if b2.ndim == 1:
        b2 = b2[None, :]
    out_dim = w2.shape[1]
    out_pad = _round_up(out_dim, 128)
    if out_pad != out_dim:
        w2 = jnp.pad(w2, ((0, 0), (0, out_pad - out_dim)))
        b2 = jnp.pad(b2, ((0, 0), (0, out_pad - out_dim)))
    return (w1.astype(jnp.bfloat16), b1.astype(jnp.float32),
            w2.astype(jnp.bfloat16), b2.astype(jnp.float32))


@functools.partial(jax.jit, static_argnames=("out_dim", "block_batch"))
def dqn_forward(x, w1, b1, w2, b2, *, out_dim, block_batch=4096):
    """Forward pass.  Params must come from prepare_dqn_params(); returns bf16 Q-values
    of shape [batch, out_dim] (cast downstream if f32 is required)."""
    batch, in_dim = x.shape
    hidden = w1.shape[1]
    out_pad = w2.shape[1]

    # --- Batch tiling --------------------------------------------------------
    # Large tiles amortize per-grid-step overhead; weights/biases use constant
    # index_maps so they stay resident in VMEM across grid steps.  Tile count is
    # chosen so batch padding is at most ~one tile (avoids a large extra HBM copy
    # of x), and we force >=2 steps at big batches so v7x can shard across its 2
    # TensorCores.  Keep block_batch <= ~4096 on v5e (16 MiB scoped-VMEM default)
    # or pass vmem_limit_bytes via CompilerParams if you go bigger.
    tb_max = _round_up(max(block_batch, 8), 8)
    num_tiles = max(1, _cdiv(batch, tb_max))
    if num_tiles == 1 and batch >= 2048:
        num_tiles = 2
    tb = _round_up(_cdiv(batch, num_tiles), 8)
    batch_pad = num_tiles * tb
    if batch_pad != batch:
        x = jnp.pad(x, ((0, batch_pad - batch), (0, 0)))

    # --- Advisory cost estimate ----------------------------------------------
    flops = 2 * batch_pad * (in_dim * hidden + hidden * out_pad)
    bytes_accessed = (
        batch_pad * in_dim * x.dtype.itemsize   # x (f32, cast in-kernel)
        + in_dim * hidden * 2                   # W1 (bf16, resident)
        + hidden * out_pad * 2                  # W2 (bf16, resident)
        + (hidden + out_pad) * 4                # biases (f32)
        + batch_pad * out_pad * 2               # output (bf16)
    )

    out = pl.pallas_call(
        dqn_kernel,
        out_shape=jax.ShapeDtypeStruct((batch_pad, out_pad), jnp.bfloat16),
        grid_spec=pltpu.PrefetchScalarGridSpec(
            num_scalar_prefetch=0,
            grid=(num_tiles,),
            in_specs=[
                pl.BlockSpec((tb, in_dim), lambda i: (i, 0)),        # x tile
                pl.BlockSpec((in_dim, hidden), lambda i: (0, 0)),    # W1 (resident)
                pl.BlockSpec((1, hidden), lambda i: (0, 0)),         # b1 (resident)
                pl.BlockSpec((hidden, out_pad), lambda i: (0, 0)),   # W2 (resident)
                pl.BlockSpec((1, out_pad), lambda i: (0, 0)),        # b2 (resident)
            ],
            out_specs=pl.BlockSpec((tb, out_pad), lambda i: (i, 0)),
        ),
        compiler_params=pltpu.CompilerParams(
            dimension_semantics=("parallel",),
        ),
        cost_estimate=pl.CostEstimate(
            flops=flops, transcendentals=0, bytes_accessed=bytes_accessed),
    )(x, w1, b1, w2, b2)

    # Strip batch padding and the (exactly-zero) lane-padding columns.
    return out[:batch, :out_dim]


def init_dqn_params(key, input_dim, output_dim, hidden=128, dtype=jnp.float32):
    """Deterministic init mimicking PyTorch Linear's U(-1/sqrt(fan_in), 1/sqrt(fan_in)).

    Weights are stored transposed: shape [in_features, out_features].
    """
    k1, k2, k3, k4 = jax.random.split(key, 4)
    bound1 = 1.0 / jnp.sqrt(jnp.asarray(input_dim, dtype))
    bound2 = 1.0 / jnp.sqrt(jnp.asarray(hidden, dtype))
    w1 = jax.random.uniform(k1, (input_dim, hidden), dtype, -bound1, bound1)
    b1 = jax.random.uniform(k2, (1, hidden), dtype, -bound1, bound1)
    w2 = jax.random.uniform(k3, (hidden, output_dim), dtype, -bound2, bound2)
    b2 = jax.random.uniform(k4, (1, output_dim), dtype, -bound2, bound2)
    return w1, b1, w2, b2


if __name__ == "__main__":
    key = jax.random.PRNGKey(0)
    k_x, k_p = jax.random.split(key)

    batch = 20         # small batch of states (not a multiple of 8: exercises padding)
    input_dim = 4      # e.g. CartPole observation dim
    output_dim = 2     # e.g. CartPole action dim
    hidden = 128

    x = jax.random.normal(k_x, (batch, input_dim), dtype=jnp.float32)
    w1, b1, w2, b2 = init_dqn_params(k_p, input_dim, output_dim, hidden)

    # One-time preprocessing (pad to 128 lanes, bf16 weights / f32 biases).
    pw1, pb1, pw2, pb2 = prepare_dqn_params(w1, b1, w2, b2)

    # Small block_batch so the demo actually iterates the batch grid (3 steps).
    out = dqn_forward(x, pw1, pb1, pw2, pb2, out_dim=output_dim, block_batch=8)
    out = jax.block_until_ready(out)

    # Pure-JAX f32 reference of the forward semantics; kernel runs bf16 on the MXU
    # with f32 accumulation and a bf16 output, so compare at bf16-level tolerance.
    ref = jnp.maximum(x @ w1 + b1, 0.0) @ w2 + b2
    assert out.shape == (batch, output_dim)
    assert jnp.allclose(out.astype(jnp.float32), ref, atol=2e-2, rtol=2e-2), (
        float(jnp.max(jnp.abs(out.astype(jnp.float32) - ref))))

    print("KERNEL_OK")
</pallas_src>

<mosaic_0001>
module attributes {stable_mosaic.version = 11 : i64} {
  func.func @dqn_kernel(%arg0: i32, %arg1: memref<8x4xf32, #tpu.memory_space<vmem>>, %arg2: memref<4x128xbf16, #tpu.memory_space<vmem>>, %arg3: memref<1x128xf32, #tpu.memory_space<vmem>>, %arg4: memref<128x128xbf16, #tpu.memory_space<vmem>>, %arg5: memref<1x128xf32, #tpu.memory_space<vmem>>, %arg6: memref<8x128xbf16, #tpu.memory_space<vmem>>) attributes {dimension_semantics = [#tpu.dimension_semantics<parallel>], iteration_bounds = array<i64: 3>, scalar_prefetch = 0 : i64, scratch_operands = 0 : i64, tpu.core_type = #tpu.core_type<tc>, window_params = [{transform_indices = @transform_0, window_bounds = array<i64: 8, 4>}, {pipeline_mode = #tpu.pipeline_mode<synchronous>, transform_indices = @transform_1, window_bounds = array<i64: 4, 128>}, {pipeline_mode = #tpu.pipeline_mode<synchronous>, transform_indices = @transform_2, window_bounds = array<i64: 1, 128>}, {pipeline_mode = #tpu.pipeline_mode<synchronous>, transform_indices = @transform_3, window_bounds = array<i64: 128, 128>}, {pipeline_mode = #tpu.pipeline_mode<synchronous>, transform_indices = @transform_4, window_bounds = array<i64: 1, 128>}, {transform_indices = @transform_5, window_bounds = array<i64: 8, 128>}]} {
    %c0 = arith.constant 0 : index
    %c0_0 = arith.constant 0 : index
    %0 = vector.load %arg1[%c0, %c0_0] : memref<8x4xf32, #tpu.memory_space<vmem>>, vector<8x4xf32>
    %1 = arith.truncf %0 : vector<8x4xf32> to vector<8x4xbf16>
    %c0_1 = arith.constant 0 : index
    %c0_2 = arith.constant 0 : index
    %2 = vector.load %arg2[%c0_1, %c0_2] : memref<4x128xbf16, #tpu.memory_space<vmem>>, vector<4x128xbf16>
    %cst = arith.constant dense<0.000000e+00> : vector<8x128xf32>
    %3 = tpu.matmul %1, %2, %cst {dimension_numbers = #tpu.dot_dimension_numbers<[1], [0], [0], [1], [0, 0, 1, 1], [], []>} : vector<8x4xbf16>, vector<4x128xbf16>, vector<8x128xf32> -> vector<8x128xf32>
    %c0_3 = arith.constant 0 : index
    %c0_4 = arith.constant 0 : index
    %4 = vector.load %arg3[%c0_3, %c0_4] : memref<1x128xf32, #tpu.memory_space<vmem>>, vector<1x128xf32>
    %5 = vector.broadcast %4 : vector<1x128xf32> to vector<8x128xf32>
    %6 = arith.addf %3, %5 : vector<8x128xf32>
    %cst_5 = arith.constant 0.000000e+00 : f32
    %7 = vector.broadcast %cst_5 : f32 to vector<8x128xf32>
    %8 = arith.maximumf %6, %7 : vector<8x128xf32>
    %9 = arith.truncf %8 : vector<8x128xf32> to vector<8x128xbf16>
    %c0_6 = arith.constant 0 : index
    %c0_7 = arith.constant 0 : index
    %10 = vector.load %arg4[%c0_6, %c0_7] : memref<128x128xbf16, #tpu.memory_space<vmem>>, vector<128x128xbf16>
    %cst_8 = arith.constant dense<0.000000e+00> : vector<8x128xf32>
    %11 = tpu.matmul %9, %10, %cst_8 {dimension_numbers = #tpu.dot_dimension_numbers<[1], [0], [0], [1], [0, 0, 1, 1], [], []>} : vector<8x128xbf16>, vector<128x128xbf16>, vector<8x128xf32> -> vector<8x128xf32>
    %c0_9 = arith.constant 0 : index
    %c0_10 = arith.constant 0 : index
    %12 = vector.load %arg5[%c0_9, %c0_10] : memref<1x128xf32, #tpu.memory_space<vmem>>, vector<1x128xf32>
    %13 = vector.broadcast %12 : vector<1x128xf32> to vector<8x128xf32>
    %14 = arith.addf %11, %13 : vector<8x128xf32>
    %15 = arith.truncf %14 : vector<8x128xf32> to vector<8x128xbf16>
    %c0_11 = arith.constant 0 : index
    %c0_12 = arith.constant 0 : index
    %16 = vector.load %arg6[%c0_11, %c0_12] : memref<8x128xbf16, #tpu.memory_space<vmem>>, vector<8x128xbf16>
    tpu.vector_store %arg6[%c0_11, %c0_12], %15 {strides = array<i32>} : memref<8x128xbf16, #tpu.memory_space<vmem>>, vector<8x128xbf16>,
    return
  }
  func.func @transform_0(%arg0: i32) -> (i32, i32) {
    %c0_i32 = arith.constant 0 : i32
    %c0_i32_0 = arith.constant 0 : i32
    return %arg0, %c0_i32 : i32, i32
  }
  func.func @transform_1(%arg0: i32) -> (i32, i32) {
    %c0_i32 = arith.constant 0 : i32
    %c0_i32_0 = arith.constant 0 : i32
    %c0_i32_1 = arith.constant 0 : i32
    return %c0_i32, %c0_i32_0 : i32, i32
  }
  func.func @transform_2(%arg0: i32) -> (i32, i32) {
    %c0_i32 = arith.constant 0 : i32
    %c0_i32_0 = arith.constant 0 : i32
    %c0_i32_1 = arith.constant 0 : i32
    return %c0_i32, %c0_i32_0 : i32, i32
  }
  func.func @transform_3(%arg0: i32) -> (i32, i32) {
    %c0_i32 = arith.constant 0 : i32
    %c0_i32_0 = arith.constant 0 : i32
    %c0_i32_1 = arith.constant 0 : i32
    return %c0_i32, %c0_i32_0 : i32, i32
  }
  func.func @transform_4(%arg0: i32) -> (i32, i32) {
    %c0_i32 = arith.constant 0 : i32
    %c0_i32_0 = arith.constant 0 : i32
    %c0_i32_1 = arith.constant 0 : i32
    return %c0_i32, %c0_i32_0 : i32, i32
  }
  func.func @transform_5(%arg0: i32) -> (i32, i32) {
    %c0_i32 = arith.constant 0 : i32
    %c0_i32_0 = arith.constant 0 : i32
    return %arg0, %c0_i32 : i32, i32
  }
}

</mosaic_0001>

<llo_original>
// kernel: dqn_forward.1
$region0: #{dqn_forward.1}
  #allocation0 [shape = 'u32[]', space=smem, size = 0x4, offset = 0x4, fixed_abs, tag = 'smem constant byte address 0x4 - core index']
  #allocation1 [shape = 'u32[144,128]{1,0:T(1,128)}', space=vmem, size = 0x12000, scoped, tag = 'internal scratch']
  %s0 = inlined_call_operand.vmem [shape: f32[24,4], index: 0, kind: input, shape index: {}]
  %s1 = inlined_call_operand.vmem [shape: bf16[4,128], index: 1, kind: input, shape index: {}]
  %s2 = inlined_call_operand.vmem [shape: f32[1,128], index: 2, kind: input, shape index: {}]
  %s3 = inlined_call_operand.vmem [shape: bf16[128,128], index: 3, kind: input, shape index: {}]
  %s4 = inlined_call_operand.vmem [shape: f32[1,128], index: 4, kind: input, shape index: {}]
  %s5 = inlined_call_operand.vmem [shape: bf16[24,128], index: 5, kind: output, shape index: {}]
  %s6 = sld [smem:[#allocation0]]
  $region53: #{dqn_forward.1} parent=0
    _
  %s8 = ssub.s32 1, %s6
  %s9 = scalar_select 0, %s8, %s6
  loop: start=0, step=1, limit=5
  $region2: #{dqn_forward.1} parent=0 // loop_pre_header
    _
  $region3: #{dqn_forward.1} parent=0 // loop_header
    %s11 = sphi 0, %s15
    %p12 = scmp.ge.s32.totalorder %s11, 5
    %s21 = sphi 0, %s23
    %s24 = sphi 0, %s21
    %s25 = sphi 0, %s24
    %s41 = sphi 0, %s25
    %s45 = sphi 0, %s45
    %s47 = sphi 0, %s45
    %s48 = sphi 0, %s47
    %s62 = sphi 0, %s48
    %s66 = sphi 0, %s66
    %s68 = sphi 0, %s66
    %s69 = sphi 0, %s68
    %s83 = sphi 0, %s69
    %s87 = sphi 0, %s87
    %s89 = sphi 0, %s87
    %s90 = sphi 0, %s89
    %s104 = sphi 0, %s90
    %s108 = sphi 0, %s108
    %s110 = sphi 0, %s108
    %s111 = sphi 0, %s110
    %s125 = sphi 0, %s111
    %s131 = sphi 0, %s133
    %s134 = sphi 0, %s131
    %s135 = sphi 0, %s134
    %s151 = sphi 0, %s135
  $region4: #{dqn_forward.1} parent=0 // loop_header_branch
    %14 = sbr.rel (%p12) target = $region8
  $region5: #{dqn_forward.1} parent=0 // loop_body
    %s16 = ssub.s32 %s11, 1
    %s17 = ssub.s32 %s11, 2
    %s18 = sadd.s32 %s11, 1
    %s19 = ssub.s32 %s11, %s18
    %p20 = scmp.eq.s32.totalorder %s19, 0
    %s22 = sadd.s32 %s21, 1
    %s23 = scalar_select %p20, %s21, %s22
    %p26 = pneg %p20
    %p27 = scmp.eq.s32.totalorder %s11, 2
    %p28 = por %p26, %p27
    %p29 = scmp.ne.s32.totalorder %s21, %s24
    %p30 = scmp.eq.s32.totalorder %s11, 0
    %p31 = por %p29, %p30
    %p32 = scmp.ne.s32.totalorder %s21, %s24
    %p33 = scmp.eq.s32.totalorder %s16, 2
    %p34 = por %p32, %p33
    %p35 = scmp.ne.s32.totalorder %s24, %s25
    %p36 = scmp.eq.s32.totalorder %s16, 0
    %p37 = por %p35, %p36
    %p38 = scmp.ne.s32.totalorder %s24, %s25
    %p39 = scmp.eq.s32.totalorder %s17, 2
    %p40 = por %p38, %p39
    %p42 = scmp.ne.s32.totalorder %s25, %s41
    %p43 = scmp.eq.s32.totalorder %s17, 0
    %p44 = por %p42, %p43
    %s46 = sadd.s32 %s45, 1
    %p49 = scmp.eq.s32.totalorder %s11, 2
    %p50 = scmp.ne.s32.totalorder %s45, %s47
    %p51 = scmp.eq.s32.totalorder %s11, 0
    %p52 = por %p50, %p51
    %p53 = scmp.ne.s32.totalorder %s45, %s47
    %p54 = scmp.eq.s32.totalorder %s16, 2
    %p55 = por %p53, %p54
    %p56 = scmp.ne.s32.totalorder %s47, %s48
    %p57 = scmp.eq.s32.totalorder %s16, 0
    %p58 = por %p56, %p57
    %p59 = scmp.ne.s32.totalorder %s47, %s48
    %p60 = scmp.eq.s32.totalorder %s17, 2
    %p61 = por %p59, %p60
    %p63 = scmp.ne.s32.totalorder %s48, %s62
    %p64 = scmp.eq.s32.totalorder %s17, 0
    %p65 = por %p63, %p64
    %s67 = sadd.s32 %s66, 1
    %p70 = scmp.eq.s32.totalorder %s11, 2
    %p71 = scmp.ne.s32.totalorder %s66, %s68
    %p72 = scmp.eq.s32.totalorder %s11, 0
    %p73 = por %p71, %p72
    %p74 = scmp.ne.s32.totalorder %s66, %s68
    %p75 = scmp.eq.s32.totalorder %s16, 2
    %p76 = por %p74, %p75
    %p77 = scmp.ne.s32.totalorder %s68, %s69
    %p78 = scmp.eq.s32.totalorder %s16, 0
    %p79 = por %p77, %p78
    %p80 = scmp.ne.s32.totalorder %s68, %s69
    %p81 = scmp.eq.s32.totalorder %s17, 2
    %p82 = por %p80, %p81
    %p84 = scmp.ne.s32.totalorder %s69, %s83
    %p85 = scmp.eq.s32.totalorder %s17, 0
    %p86 = por %p84, %p85
    %s88 = sadd.s32 %s87, 1
    %p91 = scmp.eq.s32.totalorder %s11, 2
    %p92 = scmp.ne.s32.totalorder %s87, %s89
    %p93 = scmp.eq.s32.totalorder %s11, 0
    %p94 = por %p92, %p93
    %p95 = scmp.ne.s32.totalorder %s87, %s89
    %p96 = scmp.eq.s32.totalorder %s16, 2
    %p97 = por %p95, %p96
    %p98 = scmp.ne.s32.totalorder %s89, %s90
    %p99 = scmp.eq.s32.totalorder %s16, 0
    %p100 = por %p98, %p99
    %p101 = scmp.ne.s32.totalorder %s89, %s90
    %p102 = scmp.eq.s32.totalorder %s17, 2
    %p103 = por %p101, %p102
    %p105 = scmp.ne.s32.totalorder %s90, %s104
    %p106 = scmp.eq.s32.totalorder %s17, 0
    %p107 = por %p105, %p106
    %s109 = sadd.s32 %s108, 1
    %p112 = scmp.eq.s32.totalorder %s11, 2
    %p113 = scmp.ne.s32.totalorder %s108, %s110
    %p114 = scmp.eq.s32.totalorder %s11, 0
    %p115 = por %p113, %p114
    %p116 = scmp.ne.s32.totalorder %s108, %s110
    %p117 = scmp.eq.s32.totalorder %s16, 2
    %p118 = por %p116, %p117
    %p119 = scmp.ne.s32.totalorder %s110, %s111
    %p120 = scmp.eq.s32.totalorder %s16, 0
    %p121 = por %p119, %p120
    %p122 = scmp.ne.s32.totalorder %s110, %s111
    %p123 = scmp.eq.s32.totalorder %s17, 2
    %p124 = por %p122, %p123
    %p126 = scmp.ne.s32.totalorder %s111, %s125
    %p127 = scmp.eq.s32.totalorder %s17, 0
    %p128 = por %p126, %p127
    %s129 = ssub.s32 %s11, %s18
    %p130 = scmp.eq.s32.totalorder %s129, 0
    %s132 = sadd.s32 %s131, 1
    %s133 = scalar_select %p130, %s131, %s132
    %p136 = pneg %p130
    %p137 = scmp.eq.s32.totalorder %s11, 2
    %p138 = por %p136, %p137
    %p139 = scmp.ne.s32.totalorder %s131, %s134
    %p140 = scmp.eq.s32.totalorder %s11, 0
    %p141 = por %p139, %p140
    %p142 = scmp.ne.s32.totalorder %s131, %s134
    %p143 = scmp.eq.s32.totalorder %s16, 2
    %p144 = por %p142, %p143
    %p145 = scmp.ne.s32.totalorder %s134, %s135
    %p146 = scmp.eq.s32.totalorder %s16, 0
    %p147 = por %p145, %p146
    %p148 = scmp.ne.s32.totalorder %s134, %s135
    %p149 = scmp.eq.s32.totalorder %s17, 2
    %p150 = por %p148, %p149
    %p152 = scmp.ne.s32.totalorder %s135, %s151
    %p153 = scmp.eq.s32.totalorder %s17, 0
    %p154 = por %p152, %p153
    %p155 = scmp.le.s32.totalorder 1, %s11
    %p156 = scmp.lt.s32.totalorder %s11, 4
    %p157 = pnand %p155, %p156
    %p158 = pneg %p157
    // Predicated region
    $region9: #{dqn_forward.1} parent=5 // pred_check
      _
    $region10: #{dqn_forward.1} parent=5 // pred_check_branch
      %160 = sbr.rel (%p157) target = $region12
    $region11: #{dqn_forward.1} parent=5 // pred_region
      %s161 = ssub.s32 %s11, 1
      // Predicated region
      $region13: #{dqn_forward.1} parent=11 // pred_check
        %p162 = pneg %p58
      $region14: #{dqn_forward.1} parent=11 // pred_check_branch
        %164 = sbr.rel (%p162) target = $region16
      $region15: #{dqn_forward.1} parent=11 // pred_region
        _
      $region16: #{dqn_forward.1} parent=11 // pred_fallthru
        _
      // Predicated region
      $region17: #{dqn_forward.1} parent=11 // pred_check
        %p165 = pneg %p79
      $region18: #{dqn_forward.1} parent=11 // pred_check_branch
        %167 = sbr.rel (%p165) target = $region20
      $region19: #{dqn_forward.1} parent=11 // pred_region
        _
      $region20: #{dqn_forward.1} parent=11 // pred_fallthru
        _
      // Predicated region
      $region21: #{dqn_forward.1} parent=11 // pred_check
        %p168 = pneg %p100
      $region22: #{dqn_forward.1} parent=11 // pred_check_branch
        %170 = sbr.rel (%p168) target = $region24
      $region23: #{dqn_forward.1} parent=11 // pred_region
        _
      $region24: #{dqn_forward.1} parent=11 // pred_fallthru
        _
      // Predicated region
      $region25: #{dqn_forward.1} parent=11 // pred_check
        %p171 = pneg %p121
      $region26: #{dqn_forward.1} parent=11 // pred_check_branch
        %173 = sbr.rel (%p171) target = $region28
      $region27: #{dqn_forward.1} parent=11 // pred_region
        _
      $region28: #{dqn_forward.1} parent=11 // pred_fallthru
        _
    $region12: #{dqn_forward.1} parent=5 // pred_fallthru
      _
    %p174 = scmp.lt.s32.totalorder %s11, 3
    // Predicated region
    $region29: #{dqn_forward.1} parent=5 // pred_check
      %p175 = pneg %p174
    $region30: #{dqn_forward.1} parent=5 // pred_check_branch
      %177 = sbr.rel (%p175) target = $region32
    $region31: #{dqn_forward.1} parent=5 // pred_region
      // Predicated region
      $region33: #{dqn_forward.1} parent=31 // pred_check
        %p178 = pneg %p31
      $region34: #{dqn_forward.1} parent=31 // pred_check_branch
        %180 = sbr.rel (%p178) target = $region36
      $region35: #{dqn_forward.1} parent=31 // pred_region
        %p181 = scmp.lt.s32.totalorder %s11, 2
        %s182 = scalar_select %p181, %s11, 2
        %s183 = smul.addr %s182, 8
        %s184 = scalar_lea.vmem %s0, %s183
      $region36: #{dqn_forward.1} parent=31 // pred_fallthru
        _
    $region32: #{dqn_forward.1} parent=5 // pred_fallthru
      _
    %p185 = scmp.le.s32.totalorder 1, %s11
    %p186 = scmp.lt.s32.totalorder %s11, 4
    %p187 = pnand %p185, %p186
    %p188 = pneg %p187
    // Predicated region
    $region37: #{dqn_forward.1} parent=5 // pred_check
      _
    $region38: #{dqn_forward.1} parent=5 // pred_check_branch
      %190 = sbr.rel (%p187) target = $region40
    $region39: #{dqn_forward.1} parent=5 // pred_region
      %s191 = ssub.s32 %s11, 1
      %p192 = scmp.lt.s32.totalorder %s16, 2
      %s193 = scalar_select %p192, %s16, 2
      %s194 = smul.addr %s193, 8
      %s195 = scalar_lea.vmem %s0, %s194
      %p196 = pneg %p37
      %p197 = pneg %p34
      %p198 = pneg %p58
      %p199 = pneg %p55
      %p200 = pneg %p79
      %p201 = pneg %p76
      %p202 = pneg %p100
      %p203 = pneg %p97
      %p204 = pneg %p121
      %p205 = pneg %p118
      %p206 = pneg %p147
      %p207 = pneg %p144
      %p208 = scmp.lt.s32.totalorder %s16, 2
      %s209 = scalar_select %p208, %s16, 2
      %s210 = smul.addr %s209, 4
      %s211 = scalar_lea.vmem %s5, %s210
      %p212 = scmp.lt.s32.totalorder %s16, 2
      %s213 = scalar_select %p212, %s16, 2
      %s214 = smul.addr %s213, 8
      %s215 = scalar_lea.vmem %s0, %s214
      %p216 = scmp.lt.s32.totalorder %s16, 2
      %s217 = scalar_select %p216, %s16, 2
      %s218 = smul.addr %s217, 4
      %s219 = scalar_lea.vmem %s5, %s218
      %v221 = vld [vmem:[%s215] sm:$0xff]
      %v222 = vpack.c.bf16 %v221, %v221
      %v223 = vld [vmem:[%s1] sm:$0x3]
      %v224 = vld [vmem:[%s2] sm:$0x1]
      %v226 = vlaneseq
      %v227 = vshrl.u32 %v226, 7
      %v228 = vsub.s32 0, %v227
      %v229 = vrot.slane %v224, %v228
      %vm231 = vcmask 31744
      %v233 = vsel %vm231, %v222, 0
      %vm235 = vcmask 1041408
      %v237 = vsel %vm235, %v223, 0
      %239 = vmatprep.subr.bf16.mxu0 0
      %240 = vmatpush1.bf16.msra.mxu0 %v237
      %241 = vmatprep.subr.bf16.mxu0 0
      %242 = vmatpush1.bf16.msra.mxu0 0
      %243 = vmatprep.subr.bf16.mxu0 0
      %244 = vmatpush1.bf16.msra.mxu0 0
      %245 = vmatprep.subr.bf16.mxu0 0
      %246 = vmatpush1.bf16.msra.mxu0 0
      %247 = vmatprep.subr.bf16.mxu0 0
      %248 = vmatpush1.bf16.msra.mxu0 0
      %249 = vmatprep.subr.bf16.mxu0 0
      %250 = vmatpush1.bf16.msra.mxu0 0
      %251 = vmatprep.subr.bf16.mxu0 0
      %252 = vmatpush1.bf16.msra.mxu0 0
      %253 = vmatprep.subr.bf16.mxu0 0
      %254 = vmatpush1.bf16.msra.mxu0 0
      %255 = vmatprep.subr.bf16.mxu0 0
      %256 = vmatpush1.bf16.msra.mxu0 0
      %257 = vmatprep.subr.bf16.mxu0 0
      %258 = vmatpush1.bf16.msra.mxu0 0
      %259 = vmatprep.subr.bf16.mxu0 0
      %260 = vmatpush1.bf16.msra.mxu0 0
      %261 = vmatprep.subr.bf16.mxu0 0
      %262 = vmatpush1.bf16.msra.mxu0 0
      %263 = vmatprep.subr.bf16.mxu0 0
      %264 = vmatpush1.bf16.msra.mxu0 0
      %265 = vmatprep.subr.bf16.mxu0 0
      %266 = vmatpush1.bf16.msra.mxu0 0
      %267 = vmatprep.subr.bf16.mxu0 0
      %268 = vmatpush1.bf16.msra.mxu0 0
      %269 = vmatprep.subr.bf16.mxu0 0
      %270 = vmatpush1.bf16.msra.mxu0 0
      %271 = vmatprep.mubr.bf16.mxu0 0
      %272 = vmatmul.mubr.bf16.gmra.mrb[0].mxu0 %v233
      %v273 = vpop.f32.mrb[0].mxu0
      %v274 = vadd.f32 %v229, %v273
      %v275 = vpop.f32.mrb[0].mxu0
      %v276 = vpop.f32.mrb[0].mxu0
      %v277 = vpop.f32.mrb[0].mxu0
      %278 = vdwg.mxu0
      %v279 = vmax.f32 %v274, 0.0
      %v280 = vpack.c.bf16 %v279, %v279
      %v281 = vld [vmem:[%s3] sm:$0xf]
      %v282 = vld [vmem:[%s3 + $0x4] sm:$0xf]
      %v283 = vld [vmem:[%s3 + $0x8] sm:$0xf]
      %v284 = vld [vmem:[%s3 + $0xc] sm:$0xf]
      %v285 = vld [vmem:[%s3 + $0x10] sm:$0xf]
      %v286 = vld [vmem:[%s3 + $0x14] sm:$0xf]
      %v287 = vld [vmem:[%s3 + $0x18] sm:$0xf]
      %v288 = vld [vmem:[%s3 + $0x1c] sm:$0xf]
      %v289 = vld [vmem:[%s3 + $0x20] sm:$0xf]
      %v290 = vld [vmem:[%s3 + $0x24] sm:$0xf]
      %v291 = vld [vmem:[%s3 + $0x28] sm:$0xf]
      %v292 = vld [vmem:[%s3 + $0x2c] sm:$0xf]
      %v293 = vld [vmem:[%s3 + $0x30] sm:$0xf]
      %v294 = vld [vmem:[%s3 + $0x34] sm:$0xf]
      %v295 = vld [vmem:[%s3 + $0x38] sm:$0xf]
      %v296 = vld [vmem:[%s3 + $0x3c] sm:$0xf]
      %v297 = vld [vmem:[%s4] sm:$0x1]
      %v299 = vlaneseq
      %v300 = vshrl.u32 %v299, 7
      %v301 = vsub.s32 0, %v300
      %v302 = vrot.slane %v297, %v301
      %v320 = vunpack.c.l.b16 %v281
      %v321 = vunpack.c.l.b16 %v282
      %v322 = vunpack.c.l.b16 %v283
      %v323 = vunpack.c.l.b16 %v284
      %v324 = vunpack.c.l.b16 %v285
      %v325 = vunpack.c.l.b16 %v286
      %v326 = vunpack.c.l.b16 %v287
      %v327 = vunpack.c.l.b16 %v288
      %v328 = vunpack.c.l.b16 %v289
      %v329 = vunpack.c.l.b16 %v290
      %v330 = vunpack.c.l.b16 %v291
      %v331 = vunpack.c.l.b16 %v292
      %v332 = vunpack.c.l.b16 %v293
      %v333 = vunpack.c.l.b16 %v294
      %v334 = vunpack.c.l.b16 %v295
      %v335 = vunpack.c.l.b16 %v296
      %v336 = vpack.c.b16 %v321, %v320
      %v337 = vpack.c.b16 %v323, %v322
      %v338 = vpack.c.b16 %v325, %v324
      %v339 = vpack.c.b16 %v327, %v326
      %v340 = vpack.c.b16 %v329, %v328
      %v341 = vpack.c.b16 %v331, %v330
      %v342 = vpack.c.b16 %v333, %v332
      %v343 = vpack.c.b16 %v335, %v334
      %352 = vmatprep.subr.bf16.mxu0 0
      %353 = vmatpush1.bf16.msra.mxu0 %v336
      %354 = vmatprep.subr.bf16.mxu0 0
      %355 = vmatpush1.bf16.msra.mxu0 %v337
      %356 = vmatprep.subr.bf16.mxu0 0
      %357 = vmatpush1.bf16.msra.mxu0 %v338
      %358 = vmatprep.subr.bf16.mxu0 0
      %359 = vmatpush1.bf16.msra.mxu0 %v339
      %360 = vmatprep.subr.bf16.mxu0 0
      %361 = vmatpush1.bf16.msra.mxu0 %v340
      %362 = vmatprep.subr.bf16.mxu0 0
      %363 = vmatpush1.bf16.msra.mxu0 %v341
      %364 = vmatprep.subr.bf16.mxu0 0
      %365 = vmatpush1.bf16.msra.mxu0 %v342
      %366 = vmatprep.subr.bf16.mxu0 0
      %367 = vmatpush1.bf16.msra.mxu0 %v343
      %368 = vmatprep.subr.bf16.mxu0 0
      %369 = vmatpush1.bf16.msra.mxu0 0
      %370 = vmatprep.subr.bf16.mxu0 0
      %371 = vmatpush1.bf16.msra.mxu0 0
      %372 = vmatprep.subr.bf16.mxu0 0
      %373 = vmatpush1.bf16.msra.mxu0 0
      %374 = vmatprep.subr.bf16.mxu0 0
      %375 = vmatpush1.bf16.msra.mxu0 0
      %376 = vmatprep.subr.bf16.mxu0 0
      %377 = vmatpush1.bf16.msra.mxu0 0
      %378 = vmatprep.subr.bf16.mxu0 0
      %379 = vmatpush1.bf16.msra.mxu0 0
      %380 = vmatprep.subr.bf16.mxu0 0
      %381 = vmatpush1.bf16.msra.mxu0 0
      %382 = vmatprep.subr.bf16.mxu0 0
      %383 = vmatpush1.bf16.msra.mxu0 0
      %384 = vmatprep.mubr.bf16.mxu0 0
      %385 = vmatmul.mubr.bf16.gmra.mrb[0].mxu0 %v280
      %v386 = vpop.f32.mrb[0].mxu0
      %v387 = vadd.f32 %v302, %v386
      %v388 = vpop.f32.mrb[0].mxu0
      %v389 = vpop.f32.mrb[0].mxu0
      %v390 = vpop.f32.mrb[0].mxu0
      %391 = vdwg.mxu0
      %v392 = vpack.c.bf16 %v387, %v387
      %393 = vst [vmem:[%s219] sm:$0xf] %v392
      %p394 = scmp.lt.s32.totalorder %s16, 2
      %s395 = scalar_select %p394, %s16, 2
      %s396 = smul.addr %s395, 4
      %s397 = scalar_lea.vmem %s5, %s396
      // Predicated region
      $region41: #{dqn_forward.1} parent=39 // pred_check
        %p398 = pneg %p144
      $region42: #{dqn_forward.1} parent=39 // pred_check_branch
        %400 = sbr.rel (%p398) target = $region44
      $region43: #{dqn_forward.1} parent=39 // pred_region
        _
      $region44: #{dqn_forward.1} parent=39 // pred_fallthru
        _
    $region40: #{dqn_forward.1} parent=5 // pred_fallthru
      _
    %p401 = scmp.le.s32.totalorder 2, %s11
    // Predicated region
    $region45: #{dqn_forward.1} parent=5 // pred_check
      %p402 = pneg %p401
    $region46: #{dqn_forward.1} parent=5 // pred_check_branch
      %404 = sbr.rel (%p402) target = $region48
    $region47: #{dqn_forward.1} parent=5 // pred_region
      %s405 = ssub.s32 %s11, 2
      // Predicated region
      $region49: #{dqn_forward.1} parent=47 // pred_check
        %p406 = pneg %p150
      $region50: #{dqn_forward.1} parent=47 // pred_check_branch
        %408 = sbr.rel (%p406) target = $region52
      $region51: #{dqn_forward.1} parent=47 // pred_region
        %p409 = scmp.lt.s32.totalorder %s17, 2
        %s410 = scalar_select %p409, %s17, 2
        %s411 = smul.addr %s410, 4
        %s412 = scalar_lea.vmem %s5, %s411
      $region52: #{dqn_forward.1} parent=47 // pred_fallthru
        _
    $region48: #{dqn_forward.1} parent=5 // pred_fallthru
      _
  $region6: #{dqn_forward.1} parent=0 // loop_footer
    %s15 = sadd.s32 1, %s11
  $region7: #{dqn_forward.1} parent=0 // loop_footer_branch
    %10 = sbr.rel target = $region3
  $region8: #{dqn_forward.1} parent=0 // loop_exit
    _

</llo_original>
